<compile_context>
chip_gen: v5e
topology: v5e:2x2
jax: 0.10.0
libtpu: 0.0.40
codegen_flags: <defaults>
</compile_context>

<pallas_src>
import jax
import jax.numpy as jnp
from jax.experimental import pallas as pl
from jax.experimental.pallas import tpu as pltpu

_EPS = 2.220446049250313e-16   # torch.finfo(float).eps (float64 machine epsilon)
_NEG = -1e30                   # padding logit for the 'dev' (single-group) path


def _rank_ce_train_kernel(logits_ref, labels_ref, out_ref):
    # logits_ref / labels_ref: (L, TG) tile -- slots on sublanes, groups on lanes.
    x = logits_ref[...].astype(jnp.float32)
    y = labels_ref[...].astype(jnp.float32)
    slots = x.shape[0]

    if slots <= 16:
        # Small static slot axis: unrolled pure-VPU reductions (XLU-free).
        m = x[0:1, :]
        for s in range(1, slots):
            m = jnp.maximum(m, x[s:s + 1, :])
        e = jnp.exp(x - m)
        z = e[0:1, :]
        for s in range(1, slots):
            z = z + e[s:s + 1, :]
    else:
        m = jnp.max(x, axis=0, keepdims=True)
        e = jnp.exp(x - m)
        z = jnp.sum(e, axis=0, keepdims=True)

    # labels * log(softmax + eps) == labels * (log(e + eps*Z) - log(Z))
    contrib = y * (jnp.log(e + jnp.float32(_EPS) * z) - jnp.log(z))
    partial = jnp.sum(contrib)                       # scalar partial for this tile
    # Lane-dense (1, 8, 128) output block: unmasked stores, one per grid step.
    out_ref[...] = jnp.full(out_ref.shape, partial, dtype=jnp.float32)


def _rank_ce_dev_kernel(logits_ref, labels_ref, out_ref):
    # Whole flattened tensor is a single softmax group, laid out (R, 128).
    x = logits_ref[...].astype(jnp.float32)
    y = labels_ref[...].astype(jnp.float32)
    m = jnp.max(x)
    e = jnp.exp(x - m)
    z = jnp.sum(e)
    contrib = y * (jnp.log(e + jnp.float32(_EPS) * z) - jnp.log(z))
    out_ref[0, 0] = -jnp.sum(contrib)                # single group => mean == sum


def rank_cross_entropy_loss(y_pred, y_true, num_neg: int = 1, stage: str = "train",
                            block_groups: int | None = None):
    """JAX/Pallas equivalent of RankCrossEntropyLoss.forward."""
    if stage == "train":
        rows, cols = y_pred.shape
        step = num_neg + 1
        if rows % step != 0:
            raise ValueError("number of rows must be divisible by num_neg + 1")
        g = rows // step
        slot_width = step * cols  # L

        # strided-slice + concat == plain reshape (same per-group column order
        # for logits and labels); transpose -> lane-dense (L, G).
        logits_t = y_pred.reshape(g, slot_width).T
        labels_t = y_true.reshape(g, slot_width).T

        itemsize = y_pred.dtype.itemsize
        if block_groups is None:
            # 2 inputs x 2 pipeline buffers x (L*TG*itemsize) stays far below
            # every generation's scoped-VMEM budget (v5e 16 MiB default,
            # v7x 64 MiB physical).
            tg = (2 * 1024 * 1024) // max(1, slot_width * itemsize)
            tg = max(128, (tg // 128) * 128)
            tg = min(tg, 2048)
        else:
            tg = int(block_groups)
            if tg % 128 != 0:
                raise ValueError("block_groups must be a multiple of 128")
        # never make tiles bigger than the (lane-rounded) data
        tg = min(tg, max(128, ((g + 127) // 128) * 128))

        g_pad = pl.cdiv(g, tg) * tg
        if g_pad != g:
            # padded groups have zero labels -> contribute exactly 0 to the sum
            logits_t = jnp.pad(logits_t, ((0, 0), (0, g_pad - g)))
            labels_t = jnp.pad(labels_t, ((0, 0), (0, g_pad - g)))
        num_tiles = g_pad // tg

        partials = pl.pallas_call(
            _rank_ce_train_kernel,
            out_shape=jax.ShapeDtypeStruct((num_tiles, 8, 128), jnp.float32),
            grid=(num_tiles,),
            in_specs=[
                pl.BlockSpec((slot_width, tg), lambda i: (0, i)),
                pl.BlockSpec((slot_width, tg), lambda i: (0, i)),
            ],
            out_specs=pl.BlockSpec((1, 8, 128), lambda i: (i, 0, 0)),
            compiler_params=pltpu.CompilerParams(
                dimension_semantics=("parallel",),          # megacore-friendly (v7x)
                vmem_limit_bytes=32 * 1024 * 1024,
            ),
            cost_estimate=pl.CostEstimate(
                flops=8 * g_pad * slot_width,
                transcendentals=2 * g_pad * slot_width,
                bytes_accessed=2 * g_pad * slot_width * itemsize
                + num_tiles * 8 * 128 * 4,
            ),
        )(logits_t, labels_t)

        total = jnp.sum(partials[:, 0, 0])
        return -(total / jnp.float32(g))                    # divide by true G

    elif stage == "dev":
        # The whole flattened tensor is ONE softmax group -> lane-dense (R, 128)
        # single-block kernel.  Padded logits get -1e30 (exp -> 0) and padded
        # labels 0, so softmax denominator and the sum stay exact.
        # TODO(synk): for very large eval batches this should become a tiled
        # online-softmax (two-pass) kernel instead of a single block.
        n = y_pred.size
        lanes = 128
        r = pl.cdiv(pl.cdiv(n, lanes), 8) * 8
        n_pad = r * lanes
        flat_logits = jnp.pad(y_pred.reshape(-1), (0, n_pad - n),
                              constant_values=_NEG)
        flat_labels = jnp.pad(y_true.reshape(-1), (0, n_pad - n),
                              constant_values=0)
        out = pl.pallas_call(
            _rank_ce_dev_kernel,
            out_shape=jax.ShapeDtypeStruct((1, 1), jnp.float32),
            grid=(1,),
            in_specs=[
                pl.BlockSpec((r, lanes), lambda i: (0, 0)),
                pl.BlockSpec((r, lanes), lambda i: (0, 0)),
            ],
            out_specs=pl.BlockSpec(memory_space=pltpu.SMEM),
            compiler_params=pltpu.CompilerParams(
                dimension_semantics=("arbitrary",),
                vmem_limit_bytes=32 * 1024 * 1024,
            ),
        )(flat_logits.reshape(r, lanes), flat_labels.reshape(r, lanes))
        return out[0, 0]

    else:
        raise ValueError(f"unknown stage: {stage}")


def _reference(y_pred, y_true, num_neg=1, stage="train"):
    # pure-JAX reference mirroring the PyTorch code, for verification
    if stage == "train":
        step = num_neg + 1
        logits = y_pred[::step, :]
        labels = y_true[::step, :]
        for neg_idx in range(num_neg):
            logits = jnp.concatenate([logits, y_pred[neg_idx + 1::step, :]], axis=-1)
            labels = jnp.concatenate([labels, y_true[neg_idx + 1::step, :]], axis=-1)
    else:
        logits = y_pred.reshape(1, -1)
        labels = y_true.reshape(1, -1)
    sm = jax.nn.softmax(logits, axis=-1)
    return -jnp.mean(jnp.sum(labels * jnp.log(sm + _EPS), axis=-1))


def _make_labels(num_groups, num_neg, cols):
    one_group = jnp.concatenate(
        [jnp.ones((1, cols), jnp.float32), jnp.zeros((num_neg, cols), jnp.float32)],
        axis=0)
    return jnp.tile(one_group, (num_groups, 1))


if __name__ == "__main__":
    key = jax.random.PRNGKey(0)
    k1, k2, k3 = jax.random.split(key, 3)

    # --- case 1: typical ranking setup (C == 1), single tile + group padding ---
    num_neg, num_groups, C = 3, 8, 1
    y_pred = jax.random.normal(k1, (num_groups * (num_neg + 1), C), jnp.float32)
    y_true = _make_labels(num_groups, num_neg, C)
    loss = rank_cross_entropy_loss(y_pred, y_true, num_neg=num_neg, stage="train")
    loss = jax.block_until_ready(loss)
    ref = _reference(y_pred, y_true, num_neg=num_neg, stage="train")
    assert jnp.allclose(loss, ref, rtol=1e-5, atol=1e-6), (loss, ref)

    # --- case 2: multi-tile grid + remainder masking (G=300, TG=128) ---
    num_groups2 = 300
    y_pred2 = jax.random.normal(k2, (num_groups2 * (num_neg + 1), C), jnp.float32)
    y_true2 = _make_labels(num_groups2, num_neg, C)
    loss2 = rank_cross_entropy_loss(y_pred2, y_true2, num_neg=num_neg,
                                    stage="train", block_groups=128)
    loss2 = jax.block_until_ready(loss2)
    ref2 = _reference(y_pred2, y_true2, num_neg=num_neg, stage="train")
    assert jnp.allclose(loss2, ref2, rtol=1e-5, atol=1e-6), (loss2, ref2)

    # --- case 3: C > 1 (slot width not a multiple of 8) ---
    num_neg3, num_groups3, C3 = 2, 8, 3
    y_pred3 = jax.random.normal(k3, (num_groups3 * (num_neg3 + 1), C3), jnp.float32)
    y_true3 = _make_labels(num_groups3, num_neg3, C3)
    loss3 = rank_cross_entropy_loss(y_pred3, y_true3, num_neg=num_neg3, stage="train")
    loss3 = jax.block_until_ready(loss3)
    ref3 = _reference(y_pred3, y_true3, num_neg=num_neg3, stage="train")
    assert jnp.allclose(loss3, ref3, rtol=1e-5, atol=1e-6), (loss3, ref3)

    # --- case 4: 'dev' branch (single global softmax group) ---
    loss_dev = rank_cross_entropy_loss(y_pred, y_true, num_neg=num_neg, stage="dev")
    loss_dev = jax.block_until_ready(loss_dev)
    ref_dev = _reference(y_pred, y_true, num_neg=num_neg, stage="dev")
    assert jnp.allclose(loss_dev, ref_dev, rtol=1e-5, atol=1e-6), (loss_dev, ref_dev)

    print("KERNEL_OK")
</pallas_src>

<mosaic_0001>
module attributes {stable_mosaic.version = 11 : i64} {
  func.func @_rank_ce_train_kernel(%arg0: i32, %arg1: memref<4x128xf32, #tpu.memory_space<vmem>>, %arg2: memref<4x128xf32, #tpu.memory_space<vmem>>, %arg3: memref<1x8x128xf32, #tpu.memory_space<vmem>>) attributes {dimension_semantics = [#tpu.dimension_semantics<parallel>], iteration_bounds = array<i64: 1>, scalar_prefetch = 0 : i64, scratch_operands = 0 : i64, tpu.core_type = #tpu.core_type<tc>, window_params = [{transform_indices = @transform_0, window_bounds = array<i64: 4, 128>}, {transform_indices = @transform_1, window_bounds = array<i64: 4, 128>}, {transform_indices = @transform_2, window_bounds = array<i64: 1, 8, 128>}]} {
    %c0 = arith.constant 0 : index
    %c0_0 = arith.constant 0 : index
    %0 = vector.load %arg1[%c0, %c0_0] : memref<4x128xf32, #tpu.memory_space<vmem>>, vector<4x128xf32>
    %c0_1 = arith.constant 0 : index
    %c0_2 = arith.constant 0 : index
    %1 = vector.load %arg2[%c0_1, %c0_2] : memref<4x128xf32, #tpu.memory_space<vmem>>, vector<4x128xf32>
    %2 = vector.extract_strided_slice %0 {offsets = [0, 0], sizes = [1, 128], strides = [1, 1]} : vector<4x128xf32> to vector<1x128xf32>
    %3 = vector.extract_strided_slice %0 {offsets = [1, 0], sizes = [1, 128], strides = [1, 1]} : vector<4x128xf32> to vector<1x128xf32>
    %4 = arith.maximumf %2, %3 : vector<1x128xf32>
    %5 = vector.extract_strided_slice %0 {offsets = [2, 0], sizes = [1, 128], strides = [1, 1]} : vector<4x128xf32> to vector<1x128xf32>
    %6 = arith.maximumf %4, %5 : vector<1x128xf32>
    %7 = vector.extract_strided_slice %0 {offsets = [3, 0], sizes = [1, 128], strides = [1, 1]} : vector<4x128xf32> to vector<1x128xf32>
    %8 = arith.maximumf %6, %7 : vector<1x128xf32>
    %9 = vector.broadcast %8 : vector<1x128xf32> to vector<4x128xf32>
    %10 = arith.subf %0, %9 : vector<4x128xf32>
    %11 = math.exp %10 : vector<4x128xf32>
    %12 = vector.extract_strided_slice %11 {offsets = [0, 0], sizes = [1, 128], strides = [1, 1]} : vector<4x128xf32> to vector<1x128xf32>
    %13 = vector.extract_strided_slice %11 {offsets = [1, 0], sizes = [1, 128], strides = [1, 1]} : vector<4x128xf32> to vector<1x128xf32>
    %14 = arith.addf %12, %13 : vector<1x128xf32>
    %15 = vector.extract_strided_slice %11 {offsets = [2, 0], sizes = [1, 128], strides = [1, 1]} : vector<4x128xf32> to vector<1x128xf32>
    %16 = arith.addf %14, %15 : vector<1x128xf32>
    %17 = vector.extract_strided_slice %11 {offsets = [3, 0], sizes = [1, 128], strides = [1, 1]} : vector<4x128xf32> to vector<1x128xf32>
    %18 = arith.addf %16, %17 : vector<1x128xf32>
    %cst = arith.constant 2.22044605E-16 : f32
    %19 = vector.broadcast %cst : f32 to vector<1x128xf32>
    %20 = arith.mulf %19, %18 : vector<1x128xf32>
    %21 = vector.broadcast %20 : vector<1x128xf32> to vector<4x128xf32>
    %22 = arith.addf %11, %21 : vector<4x128xf32>
    %23 = math.log %22 : vector<4x128xf32>
    %24 = math.log %18 : vector<1x128xf32>
    %25 = vector.broadcast %24 : vector<1x128xf32> to vector<4x128xf32>
    %26 = arith.subf %23, %25 : vector<4x128xf32>
    %27 = arith.mulf %1, %26 : vector<4x128xf32>
    %28 = vector.shape_cast %27 : vector<4x128xf32> to vector<1x4x128xf32>
    %cst_3 = arith.constant dense<0.000000e+00> : vector<1xf32>
    %29 = vector.multi_reduction <add>, %28, %cst_3 [1, 2] : vector<1x4x128xf32> to vector<1xf32>
    %30 = vector.shape_cast %29 : vector<1xf32> to vector<1x1x1xf32>
    %31 = vector.extract %30[0, 0, 0] : f32 from vector<1x1x1xf32>
    %32 = vector.broadcast %31 : f32 to vector<1x8x128xf32>
    %c0_4 = arith.constant 0 : index
    %c0_5 = arith.constant 0 : index
    %c0_6 = arith.constant 0 : index
    %33 = vector.load %arg3[%c0_4, %c0_5, %c0_6] : memref<1x8x128xf32, #tpu.memory_space<vmem>>, vector<1x8x128xf32>
    tpu.vector_store %arg3[%c0_4, %c0_5, %c0_6], %32 {strides = array<i32>} : memref<1x8x128xf32, #tpu.memory_space<vmem>>, vector<1x8x128xf32>,
    return
  }
  func.func @transform_0(%arg0: i32) -> (i32, i32) {
    %c0_i32 = arith.constant 0 : i32
    %c0_i32_0 = arith.constant 0 : i32
    return %c0_i32, %arg0 : i32, i32
  }
  func.func @transform_1(%arg0: i32) -> (i32, i32) {
    %c0_i32 = arith.constant 0 : i32
    %c0_i32_0 = arith.constant 0 : i32
    return %c0_i32, %arg0 : i32, i32
  }
  func.func @transform_2(%arg0: i32) -> (i32, i32, i32) {
    %c0_i32 = arith.constant 0 : i32
    %c0_i32_0 = arith.constant 0 : i32
    %c0_i32_1 = arith.constant 0 : i32
    return %arg0, %c0_i32, %c0_i32_0 : i32, i32, i32
  }
}

</mosaic_0001>

<llo_original>
// kernel: tpu_custom_call.1
$region0: #{tpu_custom_call.1}
  #allocation0 [shape = 'u32[]', space=smem, size = 0x4, offset = 0x4, fixed_abs, tag = 'smem constant byte address 0x4 - core index']
  #allocation1 [shape = 'u32[72,128]{1,0:T(1,128)}', space=vmem, size = 0x9000, scoped, tag = 'internal scratch']
  %s0 = inlined_call_operand.hbm [shape: f32[4,128], index: 0, kind: input, shape index: {}]
  %s1 = inlined_call_operand.hbm [shape: f32[4,128], index: 1, kind: input, shape index: {}]
  %s2 = inlined_call_operand.hbm [shape: f32[1,8,128], index: 2, kind: output, shape index: {}]
  %s3 = sld [smem:[#allocation0]]
  $region26: #{tpu_custom_call.1} parent=0
    _
  %s5 = ssub.s32 1, %s3
  %s6 = scalar_select 0, %s5, %s3
  $region1: #{tpu_custom_call.1} parent=0
    #allocation2 [shape = 'u8[2048]{0}', space=vmem, size = 0x800, scoped, tag = 'input window, operand 0, single buffered']
    #allocation3 [shape = 's32[1]{0}', space=sflag, size = 0x4, scoped, tag = 'scoped memory for tpu_custom_call.1']
    #allocation4 [shape = 's32[1]{0}', space=sflag, size = 0x4, scoped, tag = 'scoped memory for tpu_custom_call.1']
    #allocation5 [shape = 'u8[2048]{0}', space=vmem, size = 0x800, scoped, tag = 'input window, operand 1, single buffered']
    #allocation6 [shape = 's32[1]{0}', space=sflag, size = 0x4, scoped, tag = 'scoped memory for tpu_custom_call.1']
    #allocation7 [shape = 'u8[4096]{0}', space=vmem, size = 0x1000, scoped, tag = 'output window, operand 0, single buffered']
    %7 = vsyncpa [#allocation3], 0
    %8 = vsyncpa [#allocation6], 0
    %9 = vsyncpa [#allocation4], 0
    // Predicated region
    $region2: #{tpu_custom_call.1} parent=1 // pred_check
      _
    $region3: #{tpu_custom_call.1} parent=1 // pred_check_branch
      %11 = sbr.rel (0) target = $region5
    $region4: #{tpu_custom_call.1} parent=1 // pred_region
      %13 = vsyncadd [#allocation3], 0
      %s15 = sshll.u32 %s0, 4
      %s16 = int_to_ptr.hbm [resolvable:$true] %s15
      %s17 = sshll.u32 [#allocation2], 4
      %s18 = int_to_ptr.vmem [resolvable:$true] %s17
      %20 = dma.hbm_to_vmem [thread:$0]  %s16, 64, %s18, [#allocation3]
    $region5: #{tpu_custom_call.1} parent=1 // pred_fallthru
      _
    // Predicated region
    $region6: #{tpu_custom_call.1} parent=1 // pred_check
      _
    $region7: #{tpu_custom_call.1} parent=1 // pred_check_branch
      %22 = sbr.rel (0) target = $region9
    $region8: #{tpu_custom_call.1} parent=1 // pred_region
      %24 = vsyncadd [#allocation6], 0
      %s26 = sshll.u32 %s1, 4
      %s27 = int_to_ptr.hbm [resolvable:$true] %s26
      %s28 = sshll.u32 [#allocation5], 4
      %s29 = int_to_ptr.vmem [resolvable:$true] %s28
      %31 = dma.hbm_to_vmem [thread:$0]  %s27, 64, %s29, [#allocation6]
    $region9: #{tpu_custom_call.1} parent=1 // pred_fallthru
      _
    // Predicated region
    $region10: #{tpu_custom_call.1} parent=1 // pred_check
      _
    $region11: #{tpu_custom_call.1} parent=1 // pred_check_branch
      %33 = sbr.rel (0) target = $region13
    $region12: #{tpu_custom_call.1} parent=1 // pred_region
      %35 = dma.done [#allocation3], 64
    $region13: #{tpu_custom_call.1} parent=1 // pred_fallthru
      _
    // Predicated region
    $region14: #{tpu_custom_call.1} parent=1 // pred_check
      _
    $region15: #{tpu_custom_call.1} parent=1 // pred_check_branch
      %37 = sbr.rel (0) target = $region17
    $region16: #{tpu_custom_call.1} parent=1 // pred_region
      %39 = dma.done [#allocation6], 64
    $region17: #{tpu_custom_call.1} parent=1 // pred_fallthru
      _
    %v40 = vld [vmem:[#allocation2] sm:$0xf]
    %v41 = vld [vmem:[#allocation5] sm:$0xf]
    %v43 = vrot.slane %v40, 1
    %v45 = vmax.f32 %v40, %v43
    %v46 = vrot.slane %v40, 2
    %v48 = vmax.f32 %v45, %v46
    %v49 = vrot.slane %v40, 3
    %v51 = vmax.f32 %v48, %v49
    %v52 = vperm.slane %v51, 0
    %v53 = vsub.f32 %v40, %v52
    %v54 = vmul.f32 %v53, 1.442695
    %v55 = vpow.pop %v54
    %v57 = vrot.slane %v55, 1
    %v59 = vadd.f32 %v55, %v57
    %v60 = vrot.slane %v55, 2
    %v62 = vadd.f32 %v59, %v60
    %v63 = vrot.slane %v55, 3
    %v65 = vadd.f32 %v62, %v63
    %v66 = vmul.f32 %v65, 2.220446e-16
    %v67 = vperm.slane %v66, 0
    %v68 = vadd.f32 %v55, %v67
    %v69 = vlog2.pop %v68
    %v70 = vmul.f32 %v69, 0.6931472
    %v71 = vlog2.pop %v65
    %v72 = vmul.f32 %v71, 0.6931472
    %v73 = vperm.slane %v72, 0
    %v74 = vsub.f32 %v70, %v73
    %v75 = vmul.f32 %v41, %v74
    %vm76 = vcmask 1043456
    %v77 = vsel %vm76, %v75, 0.0
    %78 = vadd.xlane.f32.xlu0 %v77
    %v79 = vpop.xlane.xlu0 %78
    %v80 = vrot.slane %v79, 4
    %v81 = vadd.f32 %v79, %v80
    %v82 = vrot.slane %v81, 2
    %v83 = vadd.f32 %v81, %v82
    %v84 = vrot.slane %v83, 1
    %v85 = vadd.f32 %v83, %v84
    %s86 = vtos %v85
    %v87 = vstv %s86
    %88 = vst [vmem:[#allocation7] sm:$0xff] %v87
    // Predicated region
    $region18: #{tpu_custom_call.1} parent=1 // pred_check
      _
    $region19: #{tpu_custom_call.1} parent=1 // pred_check_branch
      %90 = sbr.rel (0) target = $region21
    $region20: #{tpu_custom_call.1} parent=1 // pred_region
      %92 = vsyncadd [#allocation4], 0
      %s94 = sshll.u32 [#allocation7], 4
      %s95 = int_to_ptr.vmem [resolvable:$true] %s94
      %s96 = sshll.u32 %s2, 4
      %s97 = int_to_ptr.hbm [resolvable:$true] %s96
      %99 = dma.vmem_to_hbm [thread:$0]  %s95, 128, %s97, [#allocation4]
    $region21: #{tpu_custom_call.1} parent=1 // pred_fallthru
      _
    // Predicated region
    $region22: #{tpu_custom_call.1} parent=1 // pred_check
      _
    $region23: #{tpu_custom_call.1} parent=1 // pred_check_branch
      %101 = sbr.rel (0) target = $region25
    $region24: #{tpu_custom_call.1} parent=1 // pred_region
      %103 = dma.done [#allocation4], 128
    $region25: #{tpu_custom_call.1} parent=1 // pred_fallthru
      _
    %104 = vsyncpa [#allocation3], 1
    %105 = vsyncpa [#allocation6], 1
    %106 = vsyncpa [#allocation4], 1

</llo_original>
